<compile_context>
chip_gen: v7x
topology: tpu7x:2x2x1
jax: 0.10.0
libtpu: 0.0.40
codegen_flags: <defaults>
</compile_context>

<pallas_src>
import functools

import jax
import jax.numpy as jnp
from jax.experimental import pallas as pl
from jax.experimental.pallas import tpu as pltpu


def _round_up(v, m):
    return ((v + m - 1) // m) * m


# ----------------------------------------------------------------------------
# Pallas kernel: fused (1x1 conv + BN + ReLU) x3 + running max over point tiles.
# ----------------------------------------------------------------------------
def point_center_kernel(x_ref, w1_ref, b1_ref, w2_ref, b2_ref, w3_ref, b3_ref,
                        out_ref):
    n = pl.program_id(1)

    x = x_ref[0]                                        # (TN, 3)   f32
    w1 = w1_ref[...]                                    # (3, 128)  f32

    # conv1 (3 -> 128) + bn1 + relu  -- on the VPU (K=3 would waste an MXU pass)
    h1 = (x[:, 0:1] * w1[0:1, :]
          + x[:, 1:2] * w1[1:2, :]
          + x[:, 2:3] * w1[2:3, :]
          + b1_ref[...])
    h1 = jnp.maximum(h1, 0.0)                           # (TN, 128) f32

    # conv2 (128 -> 256) + bn2 + relu -- bf16 MXU, f32 accumulation
    h2 = jnp.dot(h1.astype(jnp.bfloat16), w2_ref[...],
                 preferred_element_type=jnp.float32)
    h2 = jnp.maximum(h2 + b2_ref[...], 0.0)             # (TN, 256) f32

    # conv3 (256 -> 512) + bn3 -- bf16 MXU; bias hoisted to the finalize step
    h3 = jnp.dot(h2.astype(jnp.bfloat16), w3_ref[...],
                 preferred_element_type=jnp.float32)    # (TN, 512) f32

    tile_max = jnp.max(h3, axis=0, keepdims=True)       # (1, 512)

    @pl.when(n == 0)
    def _():
        out_ref[0] = tile_max

    @pl.when(n > 0)
    def _():
        out_ref[0] = jnp.maximum(out_ref[0], tile_max)

    @pl.when(n == pl.num_programs(1) - 1)
    def _():
        # bn3 bias is constant over the points axis: max(h + b3) == max(h) + b3
        out_ref[0] = out_ref[0] + b3_ref[...]


def point_center_features(x_nc3, params, *, tile_n=512):
    """x_nc3: (B, N, 3) float32. Returns (B, 512) max-pooled features."""
    B, N, _ = x_nc3.shape
    w1, b1, w2, b2, w3, b3 = params

    # Tile size along the points axis (multiple of 8 sublanes).
    TN = min(tile_n, _round_up(N, 8))
    N_pad = _round_up(N, TN)
    if N_pad != N:
        # Edge-pad with duplicated real points: duplicates never change the max.
        x_nc3 = jnp.pad(x_nc3, ((0, 0), (0, N_pad - N), (0, 0)), mode="edge")
    num_tiles = N_pad // TN

    def _full(shape):
        nd = len(shape)
        return pl.BlockSpec(shape, lambda b, n, _nd=nd: (0,) * _nd)

    flops = 2 * B * N_pad * (3 * 128 + 128 * 256 + 256 * 512)
    bytes_accessed = (int(x_nc3.size) * 4 + B * 512 * 4
                      + sum(int(p.size) * p.dtype.itemsize for p in params))

    # TODO(synk): on v7x with B == 1 the "parallel" batch axis leaves one
    # TensorCore idle; splitting the N-tile axis across cores with per-core
    # partial maxes would recover ~2x for single-item batches.
    out = pl.pallas_call(
        point_center_kernel,
        out_shape=jax.ShapeDtypeStruct((B, 1, 512), jnp.float32),
        grid_spec=pltpu.PrefetchScalarGridSpec(
            num_scalar_prefetch=0,
            grid=(B, num_tiles),
            in_specs=[
                pl.BlockSpec((1, TN, 3), lambda b, n: (b, n, 0)),
                _full(w1.shape), _full(b1.shape),
                _full(w2.shape), _full(b2.shape),
                _full(w3.shape), _full(b3.shape),
            ],
            out_specs=pl.BlockSpec((1, 1, 512), lambda b, n: (b, 0, 0)),
        ),
        compiler_params=pltpu.CompilerParams(
            dimension_semantics=("parallel", "arbitrary")),
        cost_estimate=pl.CostEstimate(flops=flops, transcendentals=0,
                                      bytes_accessed=bytes_accessed),
    )(x_nc3, w1, b1, w2, b2, w3, b3)
    return out.reshape(B, 512)


# ----------------------------------------------------------------------------
# Parameter construction: Conv1d(k=1) weights + eval-mode BatchNorm, folded.
# conv2/conv3 weights stored in bf16 (MXU-native); everything else f32.
# ----------------------------------------------------------------------------
def make_folded_params(key, eps=1e-5):
    def conv_bn(key, cin, cout, w_dtype):
        kw, kb, kg, kbeta, km, kv = jax.random.split(key, 6)
        w = jax.random.normal(kw, (cin, cout), jnp.float32) * 0.05
        b = jax.random.normal(kb, (cout,), jnp.float32) * 0.05
        gamma = 1.0 + 0.1 * jax.random.normal(kg, (cout,), jnp.float32)
        beta = 0.1 * jax.random.normal(kbeta, (cout,), jnp.float32)
        mean = 0.1 * jax.random.normal(km, (cout,), jnp.float32)
        var = jnp.abs(jax.random.normal(kv, (cout,), jnp.float32)) + 0.5
        scale = gamma / jnp.sqrt(var + eps)
        w_fold = (w * scale[None, :]).astype(w_dtype)
        b_fold = ((b - mean) * scale + beta).reshape(1, cout)
        return w_fold, b_fold

    k1, k2, k3 = jax.random.split(key, 3)
    w1, b1 = conv_bn(k1, 3, 128, jnp.float32)      # conv1 runs on the VPU in f32
    w2, b2 = conv_bn(k2, 128, 256, jnp.bfloat16)   # MXU bf16
    w3, b3 = conv_bn(k3, 256, 512, jnp.bfloat16)   # MXU bf16
    return (w1, b1, w2, b2, w3, b3)


# ----------------------------------------------------------------------------
# Full forward: kernel hot path + one-hot/concat glue (cheap, plain JAX).
# ----------------------------------------------------------------------------
@jax.jit
def point_center_forward(x, obj, params):
    """x: (B, 3, N) float32 (PyTorch Conv1d layout). obj: (B,) or (B,1) int."""
    B = x.shape[0]
    x_nc3 = jnp.transpose(x, (0, 2, 1))                 # (B, N, 3)
    feats = point_center_features(x_nc3, params)        # (B, 512)
    x2 = feats[:, :, None]                              # (B, 512, 1)
    obj_flat = obj.reshape(-1).astype(jnp.int32)        # obj.view(-1, 1)
    one_hot2 = jax.nn.one_hot(obj_flat, 16, dtype=jnp.float32)[:, :, None]
    return jnp.concatenate([x2, one_hot2], axis=1)      # (B, 528, 1)


def reference_forward(x, obj, params):
    """Pure-JAX f32 reference (uses the same folded/bf16-rounded weights)."""
    w1, b1, w2, b2, w3, b3 = params
    xt = jnp.transpose(x, (0, 2, 1)).astype(jnp.float32)
    h1 = jnp.maximum(xt @ w1 + b1, 0.0)
    h2 = jnp.maximum(h1 @ w2.astype(jnp.float32) + b2, 0.0)
    h3 = h2 @ w3.astype(jnp.float32) + b3
    x2 = jnp.max(h3, axis=1)[:, :, None]
    oh = jax.nn.one_hot(obj.reshape(-1).astype(jnp.int32), 16,
                        dtype=jnp.float32)[:, :, None]
    return jnp.concatenate([x2, oh], axis=1)


if __name__ == "__main__":
    key = jax.random.PRNGKey(0)
    kx, kx2, kp = jax.random.split(key, 3)

    params = make_folded_params(kp)

    # Small shape consistent with the module: batch=2, 3 coords, 16 points.
    B, N = 2, 16
    x = jax.random.normal(kx, (B, 3, N), jnp.float32)
    obj = jnp.array([3, 7], dtype=jnp.int32).reshape(B, 1)

    out = jax.block_until_ready(point_center_forward(x, obj, params))
    assert out.shape == (B, 528, 1), out.shape
    ref = reference_forward(x, obj, params)
    assert jnp.allclose(out, ref, atol=2e-2, rtol=2e-2), "mismatch vs reference"

    # Second check: exercises the N-tiling + edge-padding path (600 % 512 != 0).
    N2 = 600
    x_big = jax.random.normal(kx2, (B, 3, N2), jnp.float32)
    out_big = jax.block_until_ready(point_center_forward(x_big, obj, params))
    ref_big = reference_forward(x_big, obj, params)
    assert jnp.allclose(out_big, ref_big, atol=2e-2, rtol=2e-2), \
        "mismatch vs reference (tiled path)"

    print("KERNEL_OK")
</pallas_src>

<mosaic_0001>
module attributes {stable_mosaic.version = 11 : i64} {
  func.func @point_center_kernel(%arg0: i32, %arg1: i32, %arg2: memref<1x16x3xf32, #tpu.memory_space<vmem>>, %arg3: memref<3x128xf32, #tpu.memory_space<vmem>>, %arg4: memref<1x128xf32, #tpu.memory_space<vmem>>, %arg5: memref<128x256xbf16, #tpu.memory_space<vmem>>, %arg6: memref<1x256xf32, #tpu.memory_space<vmem>>, %arg7: memref<256x512xbf16, #tpu.memory_space<vmem>>, %arg8: memref<1x512xf32, #tpu.memory_space<vmem>>, %arg9: memref<1x1x512xf32, #tpu.memory_space<vmem>>) attributes {dimension_semantics = [#tpu.dimension_semantics<parallel>, #tpu.dimension_semantics<arbitrary>], iteration_bounds = array<i64: 2, 1>, scalar_prefetch = 0 : i64, scratch_operands = 0 : i64, tpu.core_type = #tpu.core_type<tc>, window_params = [{transform_indices = @transform_0, window_bounds = array<i64: 1, 16, 3>}, {pipeline_mode = #tpu.pipeline_mode<synchronous>, transform_indices = @transform_1, window_bounds = array<i64: 3, 128>}, {pipeline_mode = #tpu.pipeline_mode<synchronous>, transform_indices = @transform_2, window_bounds = array<i64: 1, 128>}, {pipeline_mode = #tpu.pipeline_mode<synchronous>, transform_indices = @transform_3, window_bounds = array<i64: 128, 256>}, {pipeline_mode = #tpu.pipeline_mode<synchronous>, transform_indices = @transform_4, window_bounds = array<i64: 1, 256>}, {pipeline_mode = #tpu.pipeline_mode<synchronous>, transform_indices = @transform_5, window_bounds = array<i64: 256, 512>}, {pipeline_mode = #tpu.pipeline_mode<synchronous>, transform_indices = @transform_6, window_bounds = array<i64: 1, 512>}, {transform_indices = @transform_7, window_bounds = array<i64: 1, 1, 512>}]} {
    %c0 = arith.constant 0 : index
    %c0_0 = arith.constant 0 : index
    %c0_1 = arith.constant 0 : index
    %0 = vector.load %arg2[%c0, %c0_0, %c0_1] : memref<1x16x3xf32, #tpu.memory_space<vmem>>, vector<1x16x3xf32>
    %1 = vector.shape_cast %0 : vector<1x16x3xf32> to vector<16x3xf32>
    %c0_2 = arith.constant 0 : index
    %c0_3 = arith.constant 0 : index
    %2 = vector.load %arg3[%c0_2, %c0_3] : memref<3x128xf32, #tpu.memory_space<vmem>>, vector<3x128xf32>
    %3 = vector.extract_strided_slice %1 {offsets = [0, 0], sizes = [16, 1], strides = [1, 1]} : vector<16x3xf32> to vector<16x1xf32>
    %4 = vector.extract_strided_slice %2 {offsets = [0, 0], sizes = [1, 128], strides = [1, 1]} : vector<3x128xf32> to vector<1x128xf32>
    %5 = vector.broadcast %3 : vector<16x1xf32> to vector<16x128xf32>
    %6 = vector.broadcast %4 : vector<1x128xf32> to vector<16x128xf32>
    %7 = arith.mulf %5, %6 : vector<16x128xf32>
    %8 = vector.extract_strided_slice %1 {offsets = [0, 1], sizes = [16, 1], strides = [1, 1]} : vector<16x3xf32> to vector<16x1xf32>
    %9 = vector.extract_strided_slice %2 {offsets = [1, 0], sizes = [1, 128], strides = [1, 1]} : vector<3x128xf32> to vector<1x128xf32>
    %10 = vector.broadcast %8 : vector<16x1xf32> to vector<16x128xf32>
    %11 = vector.broadcast %9 : vector<1x128xf32> to vector<16x128xf32>
    %12 = arith.mulf %10, %11 : vector<16x128xf32>
    %13 = arith.addf %7, %12 : vector<16x128xf32>
    %14 = vector.extract_strided_slice %1 {offsets = [0, 2], sizes = [16, 1], strides = [1, 1]} : vector<16x3xf32> to vector<16x1xf32>
    %15 = vector.extract_strided_slice %2 {offsets = [2, 0], sizes = [1, 128], strides = [1, 1]} : vector<3x128xf32> to vector<1x128xf32>
    %16 = vector.broadcast %14 : vector<16x1xf32> to vector<16x128xf32>
    %17 = vector.broadcast %15 : vector<1x128xf32> to vector<16x128xf32>
    %18 = arith.mulf %16, %17 : vector<16x128xf32>
    %19 = arith.addf %13, %18 : vector<16x128xf32>
    %c0_4 = arith.constant 0 : index
    %c0_5 = arith.constant 0 : index
    %20 = vector.load %arg4[%c0_4, %c0_5] : memref<1x128xf32, #tpu.memory_space<vmem>>, vector<1x128xf32>
    %21 = vector.broadcast %20 : vector<1x128xf32> to vector<16x128xf32>
    %22 = arith.addf %19, %21 : vector<16x128xf32>
    %cst = arith.constant 0.000000e+00 : f32
    %23 = vector.broadcast %cst : f32 to vector<16x128xf32>
    %24 = arith.maximumf %22, %23 : vector<16x128xf32>
    %25 = arith.truncf %24 : vector<16x128xf32> to vector<16x128xbf16>
    %c0_6 = arith.constant 0 : index
    %c0_7 = arith.constant 0 : index
    %26 = vector.load %arg5[%c0_6, %c0_7] : memref<128x256xbf16, #tpu.memory_space<vmem>>, vector<128x256xbf16>
    %cst_8 = arith.constant dense<0.000000e+00> : vector<16x256xf32>
    %27 = tpu.matmul %25, %26, %cst_8 {dimension_numbers = #tpu.dot_dimension_numbers<[1], [0], [0], [1], [0, 0, 1, 1], [], []>} : vector<16x128xbf16>, vector<128x256xbf16>, vector<16x256xf32> -> vector<16x256xf32>
    %c0_9 = arith.constant 0 : index
    %c0_10 = arith.constant 0 : index
    %28 = vector.load %arg6[%c0_9, %c0_10] : memref<1x256xf32, #tpu.memory_space<vmem>>, vector<1x256xf32>
    %29 = vector.broadcast %28 : vector<1x256xf32> to vector<16x256xf32>
    %30 = arith.addf %27, %29 : vector<16x256xf32>
    %cst_11 = arith.constant 0.000000e+00 : f32
    %31 = vector.broadcast %cst_11 : f32 to vector<16x256xf32>
    %32 = arith.maximumf %30, %31 : vector<16x256xf32>
    %33 = arith.truncf %32 : vector<16x256xf32> to vector<16x256xbf16>
    %c0_12 = arith.constant 0 : index
    %c0_13 = arith.constant 0 : index
    %34 = vector.load %arg7[%c0_12, %c0_13] : memref<256x512xbf16, #tpu.memory_space<vmem>>, vector<256x512xbf16>
    %cst_14 = arith.constant dense<0.000000e+00> : vector<16x512xf32>
    %35 = tpu.matmul %33, %34, %cst_14 {dimension_numbers = #tpu.dot_dimension_numbers<[1], [0], [0], [1], [0, 0, 1, 1], [], []>} : vector<16x256xbf16>, vector<256x512xbf16>, vector<16x512xf32> -> vector<16x512xf32>
    %cst_15 = arith.constant dense<0xFF800000> : vector<512xf32>
    %36 = vector.multi_reduction <maximumf>, %35, %cst_15 [0] : vector<16x512xf32> to vector<512xf32>
    %37 = vector.shape_cast %36 : vector<512xf32> to vector<1x512xf32>
    %c0_i32 = arith.constant 0 : i32
    %38 = arith.cmpi eq, %arg1, %c0_i32 : i32
    %39 = arith.extui %38 : i1 to i32
    %c0_i32_16 = arith.constant 0 : i32
    %40 = arith.cmpi ne, %39, %c0_i32_16 : i32
    scf.if %40 {
      %c0_21 = arith.constant 0 : index
      %c0_22 = arith.constant 0 : index
      %c0_23 = arith.constant 0 : index
      %47 = vector.load %arg9[%c0_21, %c0_22, %c0_23] : memref<1x1x512xf32, #tpu.memory_space<vmem>>, vector<1x1x512xf32>
      %48 = vector.shape_cast %47 : vector<1x1x512xf32> to vector<1x512xf32>
      %49 = vector.shape_cast %37 : vector<1x512xf32> to vector<1x1x512xf32>
      tpu.vector_store %arg9[%c0_21, %c0_22, %c0_23], %49 {strides = array<i32>} : memref<1x1x512xf32, #tpu.memory_space<vmem>>, vector<1x1x512xf32>,
    } else {
    }
    %c0_i32_17 = arith.constant 0 : i32
    %41 = arith.cmpi sgt, %arg1, %c0_i32_17 : i32
    %42 = arith.extui %41 : i1 to i32
    %c0_i32_18 = arith.constant 0 : i32
    %43 = arith.cmpi ne, %42, %c0_i32_18 : i32
    scf.if %43 {
      %c0_21 = arith.constant 0 : index
      %c0_22 = arith.constant 0 : index
      %c0_23 = arith.constant 0 : index
      %47 = vector.load %arg9[%c0_21, %c0_22, %c0_23] : memref<1x1x512xf32, #tpu.memory_space<vmem>>, vector<1x1x512xf32>
      %48 = vector.shape_cast %47 : vector<1x1x512xf32> to vector<1x512xf32>
      %49 = arith.maximumf %48, %37 : vector<1x512xf32>
      %c0_24 = arith.constant 0 : index
      %c0_25 = arith.constant 0 : index
      %c0_26 = arith.constant 0 : index
      %50 = vector.load %arg9[%c0_24, %c0_25, %c0_26] : memref<1x1x512xf32, #tpu.memory_space<vmem>>, vector<1x1x512xf32>
      %51 = vector.shape_cast %50 : vector<1x1x512xf32> to vector<1x512xf32>
      %52 = vector.shape_cast %49 : vector<1x512xf32> to vector<1x1x512xf32>
      tpu.vector_store %arg9[%c0_24, %c0_25, %c0_26], %52 {strides = array<i32>} : memref<1x1x512xf32, #tpu.memory_space<vmem>>, vector<1x1x512xf32>,
    } else {
    }
    %c0_i32_19 = arith.constant 0 : i32
    %44 = arith.cmpi eq, %arg1, %c0_i32_19 : i32
    %45 = arith.extui %44 : i1 to i32
    %c0_i32_20 = arith.constant 0 : i32
    %46 = arith.cmpi ne, %45, %c0_i32_20 : i32
    scf.if %46 {
      %c0_21 = arith.constant 0 : index
      %c0_22 = arith.constant 0 : index
      %c0_23 = arith.constant 0 : index
      %47 = vector.load %arg9[%c0_21, %c0_22, %c0_23] : memref<1x1x512xf32, #tpu.memory_space<vmem>>, vector<1x1x512xf32>
      %48 = vector.shape_cast %47 : vector<1x1x512xf32> to vector<1x512xf32>
      %c0_24 = arith.constant 0 : index
      %c0_25 = arith.constant 0 : index
      %49 = vector.load %arg8[%c0_24, %c0_25] : memref<1x512xf32, #tpu.memory_space<vmem>>, vector<1x512xf32>
      %50 = arith.addf %48, %49 : vector<1x512xf32>
      %c0_26 = arith.constant 0 : index
      %c0_27 = arith.constant 0 : index
      %c0_28 = arith.constant 0 : index
      %51 = vector.load %arg9[%c0_26, %c0_27, %c0_28] : memref<1x1x512xf32, #tpu.memory_space<vmem>>, vector<1x1x512xf32>
      %52 = vector.shape_cast %51 : vector<1x1x512xf32> to vector<1x512xf32>
      %53 = vector.shape_cast %50 : vector<1x512xf32> to vector<1x1x512xf32>
      tpu.vector_store %arg9[%c0_26, %c0_27, %c0_28], %53 {strides = array<i32>} : memref<1x1x512xf32, #tpu.memory_space<vmem>>, vector<1x1x512xf32>,
    } else {
    }
    return
  }
  func.func @transform_0(%arg0: i32, %arg1: i32) -> (i32, i32, i32) {
    %c0_i32 = arith.constant 0 : i32
    %c0_i32_0 = arith.constant 0 : i32
    return %arg0, %arg1, %c0_i32 : i32, i32, i32
  }
  func.func @transform_1(%arg0: i32, %arg1: i32) -> (i32, i32) {
    %c0_i32 = arith.constant 0 : i32
    %c0_i32_0 = arith.constant 0 : i32
    %c0_i32_1 = arith.constant 0 : i32
    return %c0_i32, %c0_i32_0 : i32, i32
  }
  func.func @transform_2(%arg0: i32, %arg1: i32) -> (i32, i32) {
    %c0_i32 = arith.constant 0 : i32
    %c0_i32_0 = arith.constant 0 : i32
    %c0_i32_1 = arith.constant 0 : i32
    return %c0_i32, %c0_i32_0 : i32, i32
  }
  func.func @transform_3(%arg0: i32, %arg1: i32) -> (i32, i32) {
    %c0_i32 = arith.constant 0 : i32
    %c0_i32_0 = arith.constant 0 : i32
    %c0_i32_1 = arith.constant 0 : i32
    return %c0_i32, %c0_i32_0 : i32, i32
  }
  func.func @transform_4(%arg0: i32, %arg1: i32) -> (i32, i32) {
    %c0_i32 = arith.constant 0 : i32
    %c0_i32_0 = arith.constant 0 : i32
    %c0_i32_1 = arith.constant 0 : i32
    return %c0_i32, %c0_i32_0 : i32, i32
  }
  func.func @transform_5(%arg0: i32, %arg1: i32) -> (i32, i32) {
    %c0_i32 = arith.constant 0 : i32
    %c0_i32_0 = arith.constant 0 : i32
    %c0_i32_1 = arith.constant 0 : i32
    return %c0_i32, %c0_i32_0 : i32, i32
  }
  func.func @transform_6(%arg0: i32, %arg1: i32) -> (i32, i32) {
    %c0_i32 = arith.constant 0 : i32
    %c0_i32_0 = arith.constant 0 : i32
    %c0_i32_1 = arith.constant 0 : i32
    return %c0_i32, %c0_i32_0 : i32, i32
  }
  func.func @transform_7(%arg0: i32, %arg1: i32) -> (i32, i32, i32) {
    %c0_i32 = arith.constant 0 : i32
    %c0_i32_0 = arith.constant 0 : i32
    %c0_i32_1 = arith.constant 0 : i32
    return %arg0, %c0_i32, %c0_i32_0 : i32, i32, i32
  }
}

</mosaic_0001>

<llo_original>
// kernel: point_center_forward.1
$region0: #{point_center_forward.1}
  #allocation0 [shape = 'u32[]', space=smem, size = 0x4, offset = 0x4, fixed_abs, tag = 'smem constant byte address 0x4 - core index']
  #allocation1 [shape = 'u32[144,128]{1,0:T(1,128)}', space=vmem, size = 0x12000, scoped, tag = 'internal scratch']
  %s0 = inlined_call_operand.vmem [shape: f32[2,16,3], index: 0, kind: input, shape index: {}]
  %s1 = inlined_call_operand.vmem [shape: f32[3,128], index: 1, kind: input, shape index: {}]
  %s2 = inlined_call_operand.vmem [shape: f32[1,128], index: 2, kind: input, shape index: {}]
  %s3 = inlined_call_operand.hbm [shape: bf16[128,256], index: 3, kind: input, shape index: {}]
  %s4 = inlined_call_operand.vmem [shape: f32[1,256], index: 4, kind: input, shape index: {}]
  %s5 = inlined_call_operand.hbm [shape: bf16[256,512], index: 5, kind: input, shape index: {}]
  %s6 = inlined_call_operand.vmem [shape: f32[1,512], index: 6, kind: input, shape index: {}]
  %s7 = inlined_call_operand.vmem [shape: f32[2,1,512], index: 7, kind: output, shape index: {}]
  %s8 = sld [smem:[#allocation0]]
  $region81: #{point_center_forward.1} parent=0
    _
  %s10 = ssub.s32 1, %s8
  %s11 = scalar_select 0, %s10, %s8
  $region1: #{point_center_forward.1} parent=0
    #allocation2 [shape = 'u8[65536]{0}', space=vmem, size = 0x10000, scoped, tag = 'input window, operand 3, single buffered']
    #allocation3 [shape = 's32[2]{0}', space=sflag, size = 0x8, scoped, tag = 'scoped memory for point_center_forward.1']
    #allocation4 [shape = 'u8[262144]{0}', space=vmem, size = 0x40000, scoped, tag = 'input window, operand 5, single buffered']
    #allocation5 [shape = 's32[1]{0}', space=sflag, size = 0x4, scoped, tag = 'scoped memory for point_center_forward.1']
    %12 = vsyncpa [#allocation3], 0
    %13 = vsyncpa [#allocation5], 0
    loop: start=0, step=1, limit=4
    $region2: #{point_center_forward.1} parent=1 // loop_pre_header
      _
    $region3: #{point_center_forward.1} parent=1 // loop_header
      %s15 = sphi 0, %s19
      %p16 = scmp.ge.s32.totalorder %s15, 4
      %s22 = sphi 0, %s34
      %s23 = sphi 0, %s30
      %s24 = sphi 0, %s22
      %s25 = sphi 0, %s23
      %s26 = sphi 0, %s24
      %s27 = sphi 0, %s25
      %s39 = sphi 0, %s41
      %s42 = sphi 0, %s39
      %s43 = sphi 0, %s42
      %s59 = sphi 0, %s43
      %s63 = sphi 0, %s63
      %s65 = sphi 0, %s63
      %s66 = sphi 0, %s65
      %s80 = sphi 0, %s66
      %s84 = sphi 0, %s84
      %s86 = sphi 0, %s84
      %s87 = sphi 0, %s86
      %s101 = sphi 0, %s87
      %s105 = sphi 0, %s105
      %s107 = sphi 0, %s105
      %s108 = sphi 0, %s107
      %s122 = sphi 0, %s108
      %s126 = sphi 0, %s126
      %s128 = sphi 0, %s126
      %s129 = sphi 0, %s128
      %s143 = sphi 0, %s129
      %s147 = sphi 0, %s147
      %s149 = sphi 0, %s147
      %s150 = sphi 0, %s149
      %s164 = sphi 0, %s150
      %s168 = sphi 0, %s168
      %s170 = sphi 0, %s168
      %s171 = sphi 0, %s170
      %s185 = sphi 0, %s171
      %s191 = sphi 0, %s193
      %s194 = sphi 0, %s191
      %s195 = sphi 0, %s194
      %s211 = sphi 0, %s195
    $region4: #{point_center_forward.1} parent=1 // loop_header_branch
      %18 = sbr.rel (%p16) target = $region8
    $region5: #{point_center_forward.1} parent=1 // loop_body
      %s20 = ssub.s32 %s15, 1
      %s21 = ssub.s32 %s15, 2
      %s28 = sadd.s32 1, %s23
      %p29 = scmp.ge.s32.totalorder %s28, 1
      %s30 = scalar_select %p29, 0, %s28
      %s31 = sadd.s32 1, %s22
      %s32 = scalar_select %p29, %s31, %s22
      %p33 = scmp.ge.s32.totalorder %s32, 2
      %s34 = scalar_select %p33, 0, %s32
      %s35 = ssub.s32 %s22, %s34
      %s36 = ssub.s32 %s23, %s30
      %s37 = sor.u32 %s35, %s36
      %p38 = scmp.eq.s32.totalorder %s37, 0
      %s40 = sadd.s32 %s39, 1
      %s41 = scalar_select %p38, %s39, %s40
      %p44 = pneg %p38
      %p45 = scmp.eq.s32.totalorder %s15, 1
      %p46 = por %p44, %p45
      %p47 = scmp.ne.s32.totalorder %s39, %s42
      %p48 = scmp.eq.s32.totalorder %s15, 0
      %p49 = por %p47, %p48
      %p50 = scmp.ne.s32.totalorder %s39, %s42
      %p51 = scmp.eq.s32.totalorder %s20, 1
      %p52 = por %p50, %p51
      %p53 = scmp.ne.s32.totalorder %s42, %s43
      %p54 = scmp.eq.s32.totalorder %s20, 0
      %p55 = por %p53, %p54
      %p56 = scmp.ne.s32.totalorder %s42, %s43
      %p57 = scmp.eq.s32.totalorder %s21, 1
      %p58 = por %p56, %p57
      %p60 = scmp.ne.s32.totalorder %s43, %s59
      %p61 = scmp.eq.s32.totalorder %s21, 0
      %p62 = por %p60, %p61
      %s64 = sadd.s32 %s63, 1
      %p67 = scmp.eq.s32.totalorder %s15, 1
      %p68 = scmp.ne.s32.totalorder %s63, %s65
      %p69 = scmp.eq.s32.totalorder %s15, 0
      %p70 = por %p68, %p69
      %p71 = scmp.ne.s32.totalorder %s63, %s65
      %p72 = scmp.eq.s32.totalorder %s20, 1
      %p73 = por %p71, %p72
      %p74 = scmp.ne.s32.totalorder %s65, %s66
      %p75 = scmp.eq.s32.totalorder %s20, 0
      %p76 = por %p74, %p75
      %p77 = scmp.ne.s32.totalorder %s65, %s66
      %p78 = scmp.eq.s32.totalorder %s21, 1
      %p79 = por %p77, %p78
      %p81 = scmp.ne.s32.totalorder %s66, %s80
      %p82 = scmp.eq.s32.totalorder %s21, 0
      %p83 = por %p81, %p82
      %s85 = sadd.s32 %s84, 1
      %p88 = scmp.eq.s32.totalorder %s15, 1
      %p89 = scmp.ne.s32.totalorder %s84, %s86
      %p90 = scmp.eq.s32.totalorder %s15, 0
      %p91 = por %p89, %p90
      %p92 = scmp.ne.s32.totalorder %s84, %s86
      %p93 = scmp.eq.s32.totalorder %s20, 1
      %p94 = por %p92, %p93
      %p95 = scmp.ne.s32.totalorder %s86, %s87
      %p96 = scmp.eq.s32.totalorder %s20, 0
      %p97 = por %p95, %p96
      %p98 = scmp.ne.s32.totalorder %s86, %s87
      %p99 = scmp.eq.s32.totalorder %s21, 1
      %p100 = por %p98, %p99
      %p102 = scmp.ne.s32.totalorder %s87, %s101
      %p103 = scmp.eq.s32.totalorder %s21, 0
      %p104 = por %p102, %p103
      %s106 = sadd.s32 %s105, 1
      %p109 = scmp.eq.s32.totalorder %s15, 1
      %p110 = scmp.ne.s32.totalorder %s105, %s107
      %p111 = scmp.eq.s32.totalorder %s15, 0
      %p112 = por %p110, %p111
      %p113 = scmp.ne.s32.totalorder %s105, %s107
      %p114 = scmp.eq.s32.totalorder %s20, 1
      %p115 = por %p113, %p114
      %p116 = scmp.ne.s32.totalorder %s107, %s108
      %p117 = scmp.eq.s32.totalorder %s20, 0
      %p118 = por %p116, %p117
      %p119 = scmp.ne.s32.totalorder %s107, %s108
      %p120 = scmp.eq.s32.totalorder %s21, 1
      %p121 = por %p119, %p120
      %p123 = scmp.ne.s32.totalorder %s108, %s122
      %p124 = scmp.eq.s32.totalorder %s21, 0
      %p125 = por %p123, %p124
      %s127 = sadd.s32 %s126, 1
      %p130 = scmp.eq.s32.totalorder %s15, 1
      %p131 = scmp.ne.s32.totalorder %s126, %s128
      %p132 = scmp.eq.s32.totalorder %s15, 0
      %p133 = por %p131, %p132
      %p134 = scmp.ne.s32.totalorder %s126, %s128
      %p135 = scmp.eq.s32.totalorder %s20, 1
      %p136 = por %p134, %p135
      %p137 = scmp.ne.s32.totalorder %s128, %s129
      %p138 = scmp.eq.s32.totalorder %s20, 0
      %p139 = por %p137, %p138
      %p140 = scmp.ne.s32.totalorder %s128, %s129
      %p141 = scmp.eq.s32.totalorder %s21, 1
      %p142 = por %p140, %p141
      %p144 = scmp.ne.s32.totalorder %s129, %s143
      %p145 = scmp.eq.s32.totalorder %s21, 0
      %p146 = por %p144, %p145
      %s148 = sadd.s32 %s147, 1
      %p151 = scmp.eq.s32.totalorder %s15, 1
      %p152 = scmp.ne.s32.totalorder %s147, %s149
      %p153 = scmp.eq.s32.totalorder %s15, 0
      %p154 = por %p152, %p153
      %p155 = scmp.ne.s32.totalorder %s147, %s149
      %p156 = scmp.eq.s32.totalorder %s20, 1
      %p157 = por %p155, %p156
      %p158 = scmp.ne.s32.totalorder %s149, %s150
      %p159 = scmp.eq.s32.totalorder %s20, 0
      %p160 = por %p158, %p159
      %p161 = scmp.ne.s32.totalorder %s149, %s150
      %p162 = scmp.eq.s32.totalorder %s21, 1
      %p163 = por %p161, %p162
      %p165 = scmp.ne.s32.totalorder %s150, %s164
      %p166 = scmp.eq.s32.totalorder %s21, 0
      %p167 = por %p165, %p166
      %s169 = sadd.s32 %s168, 1
      %p172 = scmp.eq.s32.totalorder %s15, 1
      %p173 = scmp.ne.s32.totalorder %s168, %s170
      %p174 = scmp.eq.s32.totalorder %s15, 0
      %p175 = por %p173, %p174
      %p176 = scmp.ne.s32.totalorder %s168, %s170
      %p177 = scmp.eq.s32.totalorder %s20, 1
      %p178 = por %p176, %p177
      %p179 = scmp.ne.s32.totalorder %s170, %s171
      %p180 = scmp.eq.s32.totalorder %s20, 0
      %p181 = por %p179, %p180
      %p182 = scmp.ne.s32.totalorder %s170, %s171
      %p183 = scmp.eq.s32.totalorder %s21, 1
      %p184 = por %p182, %p183
      %p186 = scmp.ne.s32.totalorder %s171, %s185
      %p187 = scmp.eq.s32.totalorder %s21, 0
      %p188 = por %p186, %p187
      %s189 = ssub.s32 %s22, %s34
      %p190 = scmp.eq.s32.totalorder %s189, 0
      %s192 = sadd.s32 %s191, 1
      %s193 = scalar_select %p190, %s191, %s192
      %p196 = pneg %p190
      %p197 = scmp.eq.s32.totalorder %s15, 1
      %p198 = por %p196, %p197
      %p199 = scmp.ne.s32.totalorder %s191, %s194
      %p200 = scmp.eq.s32.totalorder %s15, 0
      %p201 = por %p199, %p200
      %p202 = scmp.ne.s32.totalorder %s191, %s194
      %p203 = scmp.eq.s32.totalorder %s20, 1
      %p204 = por %p202, %p203
      %p205 = scmp.ne.s32.totalorder %s194, %s195
      %p206 = scmp.eq.s32.totalorder %s20, 0
      %p207 = por %p205, %p206
      %p208 = scmp.ne.s32.totalorder %s194, %s195
      %p209 = scmp.eq.s32.totalorder %s21, 1
      %p210 = por %p208, %p209
      %p212 = scmp.ne.s32.totalorder %s195, %s211
      %p213 = scmp.eq.s32.totalorder %s21, 0
      %p214 = por %p212, %p213
      %p215 = scmp.le.s32.totalorder 1, %s15
      %p216 = scmp.lt.s32.totalorder %s15, 3
      %p217 = pnand %p215, %p216
      %p218 = pneg %p217
      // Predicated region
      $region9: #{point_center_forward.1} parent=5 // pred_check
        _
      $region10: #{point_center_forward.1} parent=5 // pred_check_branch
        %220 = sbr.rel (%p217) target = $region12
      $region11: #{point_center_forward.1} parent=5 // pred_region
        %s221 = ssub.s32 %s15, 1
        // Predicated region
        $region13: #{point_center_forward.1} parent=11 // pred_check
          %p222 = pneg %p76
        $region14: #{point_center_forward.1} parent=11 // pred_check_branch
          %224 = sbr.rel (%p222) target = $region16
        $region15: #{point_center_forward.1} parent=11 // pred_region
          _
        $region16: #{point_center_forward.1} parent=11 // pred_fallthru
          _
        // Predicated region
        $region17: #{point_center_forward.1} parent=11 // pred_check
          %p225 = pneg %p97
        $region18: #{point_center_forward.1} parent=11 // pred_check_branch
          %227 = sbr.rel (%p225) target = $region20
        $region19: #{point_center_forward.1} parent=11 // pred_region
          _
        $region20: #{point_center_forward.1} parent=11 // pred_fallthru
          _
        // Predicated region
        $region21: #{point_center_forward.1} parent=11 // pred_check
          %p228 = pneg %p118
        $region22: #{point_center_forward.1} parent=11 // pred_check_branch
          %230 = sbr.rel (%p228) target = $region24
        $region23: #{point_center_forward.1} parent=11 // pred_region
          %s232 = ssub.s32 2048, 2048
          %233 = vsyncadd [#allocation3], %s232
          %s234 = sshll.u32 [#allocation2], 4
          %s235 = int_to_ptr.vmem [resolvable:$true] %s234
          %240 = dma.hbm_to_vmem [thread:$0]  %s3, 2048, %s235, [#allocation3], 128, 128, 8
        $region24: #{point_center_forward.1} parent=11 // pred_fallthru
          _
        // Predicated region
        $region25: #{point_center_forward.1} parent=11 // pred_check
          %p241 = pneg %p139
        $region26: #{point_center_forward.1} parent=11 // pred_check_branch
          %243 = sbr.rel (%p241) target = $region28
        $region27: #{point_center_forward.1} parent=11 // pred_region
          _
        $region28: #{point_center_forward.1} parent=11 // pred_fallthru
          _
        // Predicated region
        $region29: #{point_center_forward.1} parent=11 // pred_check
          %p244 = pneg %p160
        $region30: #{point_center_forward.1} parent=11 // pred_check_branch
          %246 = sbr.rel (%p244) target = $region32
        $region31: #{point_center_forward.1} parent=11 // pred_region
          %s248 = ssub.s32 8192, 8192
          %249 = vsyncadd [#allocation5], %s248
          %s250 = sshll.u32 [#allocation4], 4
          %s251 = int_to_ptr.vmem [resolvable:$true] %s250
          %256 = dma.hbm_to_vmem [thread:$0]  %s5, 8192, %s251, [#allocation5], 256, 256, 16
        $region32: #{point_center_forward.1} parent=11 // pred_fallthru
          _
        // Predicated region
        $region33: #{point_center_forward.1} parent=11 // pred_check
          %p257 = pneg %p181
        $region34: #{point_center_forward.1} parent=11 // pred_check_branch
          %259 = sbr.rel (%p257) target = $region36
        $region35: #{point_center_forward.1} parent=11 // pred_region
          _
        $region36: #{point_center_forward.1} parent=11 // pred_fallthru
          _
      $region12: #{point_center_forward.1} parent=5 // pred_fallthru
        _
      %p260 = scmp.lt.s32.totalorder %s15, 2
      // Predicated region
      $region37: #{point_center_forward.1} parent=5 // pred_check
        %p261 = pneg %p260
      $region38: #{point_center_forward.1} parent=5 // pred_check_branch
        %263 = sbr.rel (%p261) target = $region40
      $region39: #{point_center_forward.1} parent=5 // pred_region
        // Predicated region
        $region41: #{point_center_forward.1} parent=39 // pred_check
          %p264 = pneg %p49
        $region42: #{point_center_forward.1} parent=39 // pred_check_branch
          %266 = sbr.rel (%p264) target = $region44
        $region43: #{point_center_forward.1} parent=39 // pred_region
          %s267 = smul.u32 2, %s23
          %p268 = scmp.lt.s32.totalorder %s22, 1
          %s269 = scalar_select %p268, %s22, 1
          %p270 = scmp.lt.s32.totalorder %s267, 1
          %s271 = scalar_select %p270, %s267, 1
          %s272 = smul.addr %s269, 2
          %s273 = sadd.s32 %s271, %s272
          %s274 = smul.addr %s273, 8
          %s275 = scalar_lea.vmem %s0, %s274
          %s276 = smul.u32 2, %s23
        $region44: #{point_center_forward.1} parent=39 // pred_fallthru
          _
      $region40: #{point_center_forward.1} parent=5 // pred_fallthru
        _
      %p277 = scmp.le.s32.totalorder 1, %s15
      %p278 = scmp.lt.s32.totalorder %s15, 3
      %p279 = pnand %p277, %p278
      %p280 = pneg %p279
      // Predicated region
      $region45: #{point_center_forward.1} parent=5 // pred_check
        _
      $region46: #{point_center_forward.1} parent=5 // pred_check_branch
        %282 = sbr.rel (%p279) target = $region48
      $region47: #{point_center_forward.1} parent=5 // pred_region
        %s283 = ssub.s32 %s15, 1
        // Predicated region
        $region49: #{point_center_forward.1} parent=47 // pred_check
          %p284 = pneg %p118
        $region50: #{point_center_forward.1} parent=47 // pred_check_branch
          %286 = sbr.rel (%p284) target = $region52
        $region51: #{point_center_forward.1} parent=47 // pred_region
          %287 = dma.done [#allocation3], 2048
        $region52: #{point_center_forward.1} parent=47 // pred_fallthru
          _
        // Predicated region
        $region53: #{point_center_forward.1} parent=47 // pred_check
          %p288 = pneg %p160
        $region54: #{point_center_forward.1} parent=47 // pred_check_branch
          %290 = sbr.rel (%p288) target = $region56
        $region55: #{point_center_forward.1} parent=47 // pred_region
          %291 = dma.done [#allocation5], 8192
        $region56: #{point_center_forward.1} parent=47 // pred_fallthru
          _
        %s292 = smul.u32 2, %s25
        %p293 = scmp.lt.s32.totalorder %s24, 1
        %s294 = scalar_select %p293, %s24, 1
        %p295 = scmp.lt.s32.totalorder %s292, 1
        %s296 = scalar_select %p295, %s292, 1
        %s297 = smul.addr %s294, 2
        %s298 = sadd.s32 %s296, %s297
        %s299 = smul.addr %s298, 8
        %s300 = scalar_lea.vmem %s0, %s299
        %p301 = pneg %p55
        %p302 = pneg %p52
        %p303 = pneg %p76
        %p304 = pneg %p73
        %p305 = pneg %p97
        %p306 = pneg %p94
        %p307 = pneg %p118
        %p308 = pneg %p115
        %p309 = pneg %p139
        %p310 = pneg %p136
        %p311 = pneg %p160
        %p312 = pneg %p157
        %p313 = pneg %p181
        %p314 = pneg %p178
        %p315 = pneg %p207
        %p316 = pneg %p204
        %p317 = scmp.lt.s32.totalorder %s24, 1
        %s318 = scalar_select %p317, %s24, 1
        %s319 = smul.addr %s318, 4
        %s320 = scalar_lea.vmem %s7, %s319
        %s321 = smul.u32 2, %s25
        %p322 = scmp.lt.s32.totalorder %s24, 1
        %s323 = scalar_select %p322, %s24, 1
        %p324 = scmp.lt.s32.totalorder %s321, 1
        %s325 = scalar_select %p324, %s321, 1
        %s326 = smul.addr %s323, 2
        %s327 = sadd.s32 %s325, %s326
        %s328 = smul.addr %s327, 8
        %s329 = scalar_lea.vmem %s0, %s328
        %s330 = smul.u32 2, %s25
        %p331 = scmp.lt.s32.totalorder %s24, 1
        %s332 = scalar_select %p331, %s24, 1
        %s333 = smul.addr %s332, 4
        %s334 = scalar_lea.vmem %s7, %s333
        %v336 = vld [vmem:[%s329] sm:$0xff]
        %v337 = vld [vmem:[%s329 + $0x8] sm:$0xff]
        %v338 = vld [vmem:[%s1] sm:$0x7]
        %340 = vset.pattern.permute.xlu0 0
        %341 = vperm.xlu0 %340, %v336
        %v342 = vpop.permute.xlu0 %341
        %345 = vset.pattern.permute.xlu0 0
        %346 = vperm.xlu0 %345, %v337
        %v347 = vpop.permute.xlu0 %346
        %v349 = vlaneseq
        %v350 = vshrl.u32 %v349, 7
        %v351 = vsub.s32 0, %v350
        %v352 = vrot.slane %v338, %v351
        %v353 = vmul.f32 %v342, %v352
        %v354 = vmul.f32 %v347, %v352
        %355 = vset.pattern.permute.xlu0 1
        %356 = vperm.xlu0 %355, %v336
        %v357 = vpop.permute.xlu0 %356
        %359 = vset.pattern.permute.xlu0 1
        %360 = vperm.xlu0 %359, %v337
        %v361 = vpop.permute.xlu0 %360
        %v363 = vlaneseq
        %v364 = vshrl.u32 %v363, 7
        %v365 = vsub.s32 1, %v364
        %v366 = vrot.slane %v338, %v365
        %v367 = vmul.f32 %v357, %v366
        %v368 = vmul.f32 %v361, %v366
        %v369 = vadd.f32 %v353, %v367
        %v370 = vadd.f32 %v354, %v368
        %371 = vset.pattern.permute.xlu0 2
        %372 = vperm.xlu0 %371, %v336
        %v373 = vpop.permute.xlu0 %372
        %375 = vset.pattern.permute.xlu0 2
        %376 = vperm.xlu0 %375, %v337
        %v377 = vpop.permute.xlu0 %376
        %v379 = vlaneseq
        %v380 = vshrl.u32 %v379, 7
        %v381 = vsub.s32 2, %v380
        %v382 = vrot.slane %v338, %v381
        %v383 = vmul.f32 %v373, %v382
        %v384 = vmul.f32 %v377, %v382
        %v385 = vadd.f32 %v369, %v383
        %v386 = vadd.f32 %v370, %v384
        %v387 = vld [vmem:[%s2] sm:$0x1]
        %v389 = vlaneseq
        %v390 = vshrl.u32 %v389, 7
        %v391 = vsub.s32 0, %v390
        %v392 = vrot.slane %v387, %v391
        %v394 = vadd.f32 %v385, %v392
        %v395 = vadd.f32 %v386, %v392
        %v396 = vmax.f32 %v394, 0.0
        %v397 = vmax.f32 %v395, 0.0
        %v398 = vpack.c.bf16 %v397, %v396
        %v399 = vld [vmem:[#allocation2] sm:$0xff]
        %v400 = vld [vmem:[#allocation2 + $0x8] sm:$0xff]
        %v401 = vld [vmem:[#allocation2 + $0x10] sm:$0xff]
        %v402 = vld [vmem:[#allocation2 + $0x18] sm:$0xff]
        %v403 = vld [vmem:[#allocation2 + $0x20] sm:$0xff]
        %v404 = vld [vmem:[#allocation2 + $0x28] sm:$0xff]
        %v405 = vld [vmem:[#allocation2 + $0x30] sm:$0xff]
        %v406 = vld [vmem:[#allocation2 + $0x38] sm:$0xff]
        %v407 = vld [vmem:[#allocation2 + $0x40] sm:$0xff]
        %v408 = vld [vmem:[#allocation2 + $0x48] sm:$0xff]
        %v409 = vld [vmem:[#allocation2 + $0x50] sm:$0xff]
        %v410 = vld [vmem:[#allocation2 + $0x58] sm:$0xff]
        %v411 = vld [vmem:[#allocation2 + $0x60] sm:$0xff]
        %v412 = vld [vmem:[#allocation2 + $0x68] sm:$0xff]
        %v413 = vld [vmem:[#allocation2 + $0x70] sm:$0xff]
        %v414 = vld [vmem:[#allocation2 + $0x78] sm:$0xff]
        %v415 = vld [vmem:[%s4] sm:$0x3]
        %v417 = vlaneseq
        %v418 = vshrl.u32 %v417, 7
        %v419 = vsub.s32 0, %v418
        %v420 = vrot.slane %v415, %v419
        %v421 = vlaneseq
        %v422 = vshrl.u32 %v421, 7
        %v423 = vsub.s32 1, %v422
        %v424 = vrot.slane %v415, %v423
        %v443 = vunpack.c.l.b16 %v399
        %v444 = vunpack.c.h.b16 %v399
        %v445 = vunpack.c.l.b16 %v400
        %v446 = vunpack.c.h.b16 %v400
        %v447 = vunpack.c.l.b16 %v401
        %v448 = vunpack.c.h.b16 %v401
        %v449 = vunpack.c.l.b16 %v402
        %v450 = vunpack.c.h.b16 %v402
        %v451 = vunpack.c.l.b16 %v403
        %v452 = vunpack.c.h.b16 %v403
        %v453 = vunpack.c.l.b16 %v404
        %v454 = vunpack.c.h.b16 %v404
        %v455 = vunpack.c.l.b16 %v405
        %v456 = vunpack.c.h.b16 %v405
        %v457 = vunpack.c.l.b16 %v406
        %v458 = vunpack.c.h.b16 %v406
        %v459 = vunpack.c.l.b16 %v407
        %v460 = vunpack.c.h.b16 %v407
        %v461 = vunpack.c.l.b16 %v408
        %v462 = vunpack.c.h.b16 %v408
        %v463 = vunpack.c.l.b16 %v409
        %v464 = vunpack.c.h.b16 %v409
        %v465 = vunpack.c.l.b16 %v410
        %v466 = vunpack.c.h.b16 %v410
        %v467 = vunpack.c.l.b16 %v411
        %v468 = vunpack.c.h.b16 %v411
        %v469 = vunpack.c.l.b16 %v412
        %v470 = vunpack.c.h.b16 %v412
        %v471 = vunpack.c.l.b16 %v413
        %v472 = vunpack.c.h.b16 %v413
        %v473 = vunpack.c.l.b16 %v414
        %v474 = vunpack.c.h.b16 %v414
        %v475 = vpack.c.b16 %v445, %v443
        %v476 = vpack.c.b16 %v446, %v444
        %v477 = vpack.c.b16 %v449, %v447
        %v478 = vpack.c.b16 %v450, %v448
        %v479 = vpack.c.b16 %v453, %v451
        %v480 = vpack.c.b16 %v454, %v452
        %v481 = vpack.c.b16 %v457, %v455
        %v482 = vpack.c.b16 %v458, %v456
        %v483 = vpack.c.b16 %v461, %v459
        %v484 = vpack.c.b16 %v462, %v460
        %v485 = vpack.c.b16 %v465, %v463
        %v486 = vpack.c.b16 %v466, %v464
        %v487 = vpack.c.b16 %v469, %v467
        %v488 = vpack.c.b16 %v470, %v468
        %v489 = vpack.c.b16 %v473, %v471
        %v490 = vpack.c.b16 %v474, %v472
        %507 = vmatprep.subr.bf16.mxu0 %v476
        %508 = vmatpush1.bf16.msra.mxu0 %v475
        %509 = vmatprep.subr.bf16.mxu0 %v478
        %510 = vmatpush1.bf16.msra.mxu0 %v477
        %511 = vmatprep.subr.bf16.mxu0 %v480
        %512 = vmatpush1.bf16.msra.mxu0 %v479
        %513 = vmatprep.subr.bf16.mxu0 %v482
        %514 = vmatpush1.bf16.msra.mxu0 %v481
        %515 = vmatprep.subr.bf16.mxu0 %v484
        %516 = vmatpush1.bf16.msra.mxu0 %v483
        %517 = vmatprep.subr.bf16.mxu0 %v486
        %518 = vmatpush1.bf16.msra.mxu0 %v485
        %519 = vmatprep.subr.bf16.mxu0 %v488
        %520 = vmatpush1.bf16.msra.mxu0 %v487
        %521 = vmatprep.subr.bf16.mxu0 %v490
        %522 = vmatpush1.bf16.msra.mxu0 %v489
        %523 = vmatprep.subr.bf16.mxu0 0
        %524 = vmatpush1.bf16.msra.mxu0 0
        %525 = vmatprep.subr.bf16.mxu0 0
        %526 = vmatpush1.bf16.msra.mxu0 0
        %527 = vmatprep.subr.bf16.mxu0 0
        %528 = vmatpush1.bf16.msra.mxu0 0
        %529 = vmatprep.subr.bf16.mxu0 0
        %530 = vmatpush1.bf16.msra.mxu0 0
        %531 = vmatprep.subr.bf16.mxu0 0
        %532 = vmatpush1.bf16.msra.mxu0 0
        %533 = vmatprep.subr.bf16.mxu0 0
        %534 = vmatpush1.bf16.msra.mxu0 0
        %535 = vmatprep.subr.bf16.mxu0 0
        %536 = vmatpush1.bf16.msra.mxu0 0
        %537 = vmatprep.subr.bf16.mxu0 0
        %538 = vmatpush1.bf16.msra.mxu0 0
        %539 = vmatprep.mubr.bf16.mxu0 0
        %540 = vmatmul.mubr.bf16.gmra.mrb[0].mxu0 %v398
        %v541 = vpop.f32.mrb[0].mxu0
        %v542 = vadd.f32 %v420, %v541
        %v543 = vpop.f32.mrb[0].mxu0
        %v544 = vadd.f32 %v424, %v543
        %v545 = vpop.f32.mrb[0].mxu0
        %v546 = vadd.f32 %v420, %v545
        %v547 = vpop.f32.mrb[0].mxu0
        %v548 = vadd.f32 %v424, %v547
        %549 = vdwg.mxu0
        %v550 = vmax.f32 %v542, 0.0
        %v551 = vmax.f32 %v544, 0.0
        %v552 = vmax.f32 %v546, 0.0
        %v553 = vmax.f32 %v548, 0.0
        %v554 = vpack.c.bf16 %v552, %v550
        %v555 = vpack.c.bf16 %v553, %v551
        %v556 = vld [vmem:[#allocation4] sm:$0xff]
        %v557 = vld [vmem:[#allocation4 + $0x8] sm:$0xff]
        %v558 = vld [vmem:[#allocation4 + $0x10] sm:$0xff]
        %v559 = vld [vmem:[#allocation4 + $0x18] sm:$0xff]
        %v560 = vld [vmem:[#allocation4 + $0x20] sm:$0xff]
        %v561 = vld [vmem:[#allocation4 + $0x28] sm:$0xff]
        %v562 = vld [vmem:[#allocation4 + $0x30] sm:$0xff]
        %v563 = vld [vmem:[#allocation4 + $0x38] sm:$0xff]
        %v564 = vld [vmem:[#allocation4 + $0x40] sm:$0xff]
        %v565 = vld [vmem:[#allocation4 + $0x48] sm:$0xff]
        %v566 = vld [vmem:[#allocation4 + $0x50] sm:$0xff]
        %v567 = vld [vmem:[#allocation4 + $0x58] sm:$0xff]
        %v568 = vld [vmem:[#allocation4 + $0x60] sm:$0xff]
        %v569 = vld [vmem:[#allocation4 + $0x68] sm:$0xff]
        %v570 = vld [vmem:[#allocation4 + $0x70] sm:$0xff]
        %v571 = vld [vmem:[#allocation4 + $0x78] sm:$0xff]
        %v572 = vld [vmem:[#allocation4 + $0x80] sm:$0xff]
        %v573 = vld [vmem:[#allocation4 + $0x88] sm:$0xff]
        %v574 = vld [vmem:[#allocation4 + $0x90] sm:$0xff]
        %v575 = vld [vmem:[#allocation4 + $0x98] sm:$0xff]
        %v576 = vld [vmem:[#allocation4 + $0xa0] sm:$0xff]
        %v577 = vld [vmem:[#allocation4 + $0xa8] sm:$0xff]
        %v578 = vld [vmem:[#allocation4 + $0xb0] sm:$0xff]
        %v579 = vld [vmem:[#allocation4 + $0xb8] sm:$0xff]
        %v580 = vld [vmem:[#allocation4 + $0xc0] sm:$0xff]
        %v581 = vld [vmem:[#allocation4 + $0xc8] sm:$0xff]
        %v582 = vld [vmem:[#allocation4 + $0xd0] sm:$0xff]
        %v583 = vld [vmem:[#allocation4 + $0xd8] sm:$0xff]
        %v584 = vld [vmem:[#allocation4 + $0xe0] sm:$0xff]
        %v585 = vld [vmem:[#allocation4 + $0xe8] sm:$0xff]
        %v586 = vld [vmem:[#allocation4 + $0xf0] sm:$0xff]
        %v587 = vld [vmem:[#allocation4 + $0xf8] sm:$0xff]
        %v588 = vld [vmem:[#allocation4 + $0x100] sm:$0xff]
        %v589 = vld [vmem:[#allocation4 + $0x108] sm:$0xff]
        %v590 = vld [vmem:[#allocation4 + $0x110] sm:$0xff]
        %v591 = vld [vmem:[#allocation4 + $0x118] sm:$0xff]
        %v592 = vld [vmem:[#allocation4 + $0x120] sm:$0xff]
        %v593 = vld [vmem:[#allocation4 + $0x128] sm:$0xff]
        %v594 = vld [vmem:[#allocation4 + $0x130] sm:$0xff]
        %v595 = vld [vmem:[#allocation4 + $0x138] sm:$0xff]
        %v596 = vld [vmem:[#allocation4 + $0x140] sm:$0xff]
        %v597 = vld [vmem:[#allocation4 + $0x148] sm:$0xff]
        %v598 = vld [vmem:[#allocation4 + $0x150] sm:$0xff]
        %v599 = vld [vmem:[#allocation4 + $0x158] sm:$0xff]
        %v600 = vld [vmem:[#allocation4 + $0x160] sm:$0xff]
        %v601 = vld [vmem:[#allocation4 + $0x168] sm:$0xff]
        %v602 = vld [vmem:[#allocation4 + $0x170] sm:$0xff]
        %v603 = vld [vmem:[#allocation4 + $0x178] sm:$0xff]
        %v604 = vld [vmem:[#allocation4 + $0x180] sm:$0xff]
        %v605 = vld [vmem:[#allocation4 + $0x188] sm:$0xff]
        %v606 = vld [vmem:[#allocation4 + $0x190] sm:$0xff]
        %v607 = vld [vmem:[#allocation4 + $0x198] sm:$0xff]
        %v608 = vld [vmem:[#allocation4 + $0x1a0] sm:$0xff]
        %v609 = vld [vmem:[#allocation4 + $0x1a8] sm:$0xff]
        %v610 = vld [vmem:[#allocation4 + $0x1b0] sm:$0xff]
        %v611 = vld [vmem:[#allocation4 + $0x1b8] sm:$0xff]
        %v612 = vld [vmem:[#allocation4 + $0x1c0] sm:$0xff]
        %v613 = vld [vmem:[#allocation4 + $0x1c8] sm:$0xff]
        %v614 = vld [vmem:[#allocation4 + $0x1d0] sm:$0xff]
        %v615 = vld [vmem:[#allocation4 + $0x1d8] sm:$0xff]
        %v616 = vld [vmem:[#allocation4 + $0x1e0] sm:$0xff]
        %v617 = vld [vmem:[#allocation4 + $0x1e8] sm:$0xff]
        %v618 = vld [vmem:[#allocation4 + $0x1f0] sm:$0xff]
        %v619 = vld [vmem:[#allocation4 + $0x1f8] sm:$0xff]
        %v684 = vunpack.c.l.b16 %v556
        %v685 = vunpack.c.h.b16 %v556
        %v686 = vunpack.c.l.b16 %v557
        %v687 = vunpack.c.h.b16 %v557
        %v688 = vunpack.c.l.b16 %v558
        %v689 = vunpack.c.h.b16 %v558
        %v690 = vunpack.c.l.b16 %v559
        %v691 = vunpack.c.h.b16 %v559
        %v692 = vunpack.c.l.b16 %v560
        %v693 = vunpack.c.h.b16 %v560
        %v694 = vunpack.c.l.b16 %v561
        %v695 = vunpack.c.h.b16 %v561
        %v696 = vunpack.c.l.b16 %v562
        %v697 = vunpack.c.h.b16 %v562
        %v698 = vunpack.c.l.b16 %v563
        %v699 = vunpack.c.h.b16 %v563
        %v700 = vunpack.c.l.b16 %v564
        %v701 = vunpack.c.h.b16 %v564
        %v702 = vunpack.c.l.b16 %v565
        %v703 = vunpack.c.h.b16 %v565
        %v704 = vunpack.c.l.b16 %v566
        %v705 = vunpack.c.h.b16 %v566
        %v706 = vunpack.c.l.b16 %v567
        %v707 = vunpack.c.h.b16 %v567
        %v708 = vunpack.c.l.b16 %v568
        %v709 = vunpack.c.h.b16 %v568
        %v710 = vunpack.c.l.b16 %v569
        %v711 = vunpack.c.h.b16 %v569
        %v712 = vunpack.c.l.b16 %v570
        %v713 = vunpack.c.h.b16 %v570
        %v714 = vunpack.c.l.b16 %v571
        %v715 = vunpack.c.h.b16 %v571
        %v716 = vunpack.c.l.b16 %v572
        %v717 = vunpack.c.h.b16 %v572
        %v718 = vunpack.c.l.b16 %v573
        %v719 = vunpack.c.h.b16 %v573
        %v720 = vunpack.c.l.b16 %v574
        %v721 = vunpack.c.h.b16 %v574
        %v722 = vunpack.c.l.b16 %v575
        %v723 = vunpack.c.h.b16 %v575
        %v724 = vunpack.c.l.b16 %v576
        %v725 = vunpack.c.h.b16 %v576
        %v726 = vunpack.c.l.b16 %v577
        %v727 = vunpack.c.h.b16 %v577
        %v728 = vunpack.c.l.b16 %v578
        %v729 = vunpack.c.h.b16 %v578
        %v730 = vunpack.c.l.b16 %v579
        %v731 = vunpack.c.h.b16 %v579
        %v732 = vunpack.c.l.b16 %v580
        %v733 = vunpack.c.h.b16 %v580
        %v734 = vunpack.c.l.b16 %v581
        %v735 = vunpack.c.h.b16 %v581
        %v736 = vunpack.c.l.b16 %v582
        %v737 = vunpack.c.h.b16 %v582
        %v738 = vunpack.c.l.b16 %v583
        %v739 = vunpack.c.h.b16 %v583
        %v740 = vunpack.c.l.b16 %v584
        %v741 = vunpack.c.h.b16 %v584
        %v742 = vunpack.c.l.b16 %v585
        %v743 = vunpack.c.h.b16 %v585
        %v744 = vunpack.c.l.b16 %v586
        %v745 = vunpack.c.h.b16 %v586
        %v746 = vunpack.c.l.b16 %v587
        %v747 = vunpack.c.h.b16 %v587
        %v748 = vunpack.c.l.b16 %v588
        %v749 = vunpack.c.h.b16 %v588
        %v750 = vunpack.c.l.b16 %v589
        %v751 = vunpack.c.h.b16 %v589
        %v752 = vunpack.c.l.b16 %v590
        %v753 = vunpack.c.h.b16 %v590
        %v754 = vunpack.c.l.b16 %v591
        %v755 = vunpack.c.h.b16 %v591
        %v756 = vunpack.c.l.b16 %v592
        %v757 = vunpack.c.h.b16 %v592
        %v758 = vunpack.c.l.b16 %v593
        %v759 = vunpack.c.h.b16 %v593
        %v760 = vunpack.c.l.b16 %v594
        %v761 = vunpack.c.h.b16 %v594
        %v762 = vunpack.c.l.b16 %v595
        %v763 = vunpack.c.h.b16 %v595
        %v764 = vunpack.c.l.b16 %v596
        %v765 = vunpack.c.h.b16 %v596
        %v766 = vunpack.c.l.b16 %v597
        %v767 = vunpack.c.h.b16 %v597
        %v768 = vunpack.c.l.b16 %v598
        %v769 = vunpack.c.h.b16 %v598
        %v770 = vunpack.c.l.b16 %v599
        %v771 = vunpack.c.h.b16 %v599
        %v772 = vunpack.c.l.b16 %v600
        %v773 = vunpack.c.h.b16 %v600
        %v774 = vunpack.c.l.b16 %v601
        %v775 = vunpack.c.h.b16 %v601
        %v776 = vunpack.c.l.b16 %v602
        %v777 = vunpack.c.h.b16 %v602
        %v778 = vunpack.c.l.b16 %v603
        %v779 = vunpack.c.h.b16 %v603
        %v780 = vunpack.c.l.b16 %v604
        %v781 = vunpack.c.h.b16 %v604
        %v782 = vunpack.c.l.b16 %v605
        %v783 = vunpack.c.h.b16 %v605
        %v784 = vunpack.c.l.b16 %v606
        %v785 = vunpack.c.h.b16 %v606
        %v786 = vunpack.c.l.b16 %v607
        %v787 = vunpack.c.h.b16 %v607
        %v788 = vunpack.c.l.b16 %v608
        %v789 = vunpack.c.h.b16 %v608
        %v790 = vunpack.c.l.b16 %v609
        %v791 = vunpack.c.h.b16 %v609
        %v792 = vunpack.c.l.b16 %v610
        %v793 = vunpack.c.h.b16 %v610
        %v794 = vunpack.c.l.b16 %v611
        %v795 = vunpack.c.h.b16 %v611
        %v796 = vunpack.c.l.b16 %v612
        %v797 = vunpack.c.h.b16 %v612
        %v798 = vunpack.c.l.b16 %v613
        %v799 = vunpack.c.h.b16 %v613
        %v800 = vunpack.c.l.b16 %v614
        %v801 = vunpack.c.h.b16 %v614
        %v802 = vunpack.c.l.b16 %v615
        %v803 = vunpack.c.h.b16 %v615
        %v804 = vunpack.c.l.b16 %v616
        %v805 = vunpack.c.h.b16 %v616
        %v806 = vunpack.c.l.b16 %v617
        %v807 = vunpack.c.h.b16 %v617
        %v808 = vunpack.c.l.b16 %v618
        %v809 = vunpack.c.h.b16 %v618
        %v810 = vunpack.c.l.b16 %v619
        %v811 = vunpack.c.h.b16 %v619
        %v812 = vpack.c.b16 %v688, %v684
        %v813 = vpack.c.b16 %v689, %v685
        %v814 = vpack.c.b16 %v690, %v686
        %v815 = vpack.c.b16 %v691, %v687
        %v816 = vpack.c.b16 %v696, %v692
        %v817 = vpack.c.b16 %v697, %v693
        %v818 = vpack.c.b16 %v698, %v694
        %v819 = vpack.c.b16 %v699, %v695
        %v820 = vpack.c.b16 %v704, %v700
        %v821 = vpack.c.b16 %v705, %v701
        %v822 = vpack.c.b16 %v706, %v702
        %v823 = vpack.c.b16 %v707, %v703
        %v824 = vpack.c.b16 %v712, %v708
        %v825 = vpack.c.b16 %v713, %v709
        %v826 = vpack.c.b16 %v714, %v710
        %v827 = vpack.c.b16 %v715, %v711
        %v828 = vpack.c.b16 %v720, %v716
        %v829 = vpack.c.b16 %v721, %v717
        %v830 = vpack.c.b16 %v722, %v718
        %v831 = vpack.c.b16 %v723, %v719
        %v832 = vpack.c.b16 %v728, %v724
        %v833 = vpack.c.b16 %v729, %v725
        %v834 = vpack.c.b16 %v730, %v726
        %v835 = vpack.c.b16 %v731, %v727
        %v836 = vpack.c.b16 %v736, %v732
        %v837 = vpack.c.b16 %v737, %v733
        %v838 = vpack.c.b16 %v738, %v734
        %v839 = vpack.c.b16 %v739, %v735
        %v840 = vpack.c.b16 %v744, %v740
        %v841 = vpack.c.b16 %v745, %v741
        %v842 = vpack.c.b16 %v746, %v742
        %v843 = vpack.c.b16 %v747, %v743
        %v844 = vpack.c.b16 %v752, %v748
        %v845 = vpack.c.b16 %v753, %v749
        %v846 = vpack.c.b16 %v754, %v750
        %v847 = vpack.c.b16 %v755, %v751
        %v848 = vpack.c.b16 %v760, %v756
        %v849 = vpack.c.b16 %v761, %v757
        %v850 = vpack.c.b16 %v762, %v758
        %v851 = vpack.c.b16 %v763, %v759
        %v852 = vpack.c.b16 %v768, %v764
        %v853 = vpack.c.b16 %v769, %v765
        %v854 = vpack.c.b16 %v770, %v766
        %v855 = vpack.c.b16 %v771, %v767
        %v856 = vpack.c.b16 %v776, %v772
        %v857 = vpack.c.b16 %v777, %v773
        %v858 = vpack.c.b16 %v778, %v774
        %v859 = vpack.c.b16 %v779, %v775
        %v860 = vpack.c.b16 %v784, %v780
        %v861 = vpack.c.b16 %v785, %v781
        %v862 = vpack.c.b16 %v786, %v782
        %v863 = vpack.c.b16 %v787, %v783
        %v864 = vpack.c.b16 %v792, %v788
        %v865 = vpack.c.b16 %v793, %v789
        %v866 = vpack.c.b16 %v794, %v790
        %v867 = vpack.c.b16 %v795, %v791
        %v868 = vpack.c.b16 %v800, %v796
        %v869 = vpack.c.b16 %v801, %v797
        %v870 = vpack.c.b16 %v802, %v798
        %v871 = vpack.c.b16 %v803, %v799
        %v872 = vpack.c.b16 %v808, %v804
        %v873 = vpack.c.b16 %v809, %v805
        %v874 = vpack.c.b16 %v810, %v806
        %v875 = vpack.c.b16 %v811, %v807
        %940 = vmatprep.subr.bf16.mxu0 %v813
        %941 = vmatpush1.bf16.msra.mxu0 %v812
        %942 = vmatprep.subr.bf16.mxu0 %v817
        %943 = vmatpush1.bf16.msra.mxu0 %v816
        %944 = vmatprep.subr.bf16.mxu0 %v821
        %945 = vmatpush1.bf16.msra.mxu0 %v820
        %946 = vmatprep.subr.bf16.mxu0 %v825
        %947 = vmatpush1.bf16.msra.mxu0 %v824
        %948 = vmatprep.subr.bf16.mxu0 %v829
        %949 = vmatpush1.bf16.msra.mxu0 %v828
        %950 = vmatprep.subr.bf16.mxu0 %v833
        %951 = vmatpush1.bf16.msra.mxu0 %v832
        %952 = vmatprep.subr.bf16.mxu0 %v837
        %953 = vmatpush1.bf16.msra.mxu0 %v836
        %954 = vmatprep.subr.bf16.mxu0 %v841
        %955 = vmatpush1.bf16.msra.mxu0 %v840
        %956 = vmatprep.subr.bf16.mxu0 %v845
        %957 = vmatpush1.bf16.msra.mxu0 %v844
        %958 = vmatprep.subr.bf16.mxu0 %v849
        %959 = vmatpush1.bf16.msra.mxu0 %v848
        %960 = vmatprep.subr.bf16.mxu0 %v853
        %961 = vmatpush1.bf16.msra.mxu0 %v852
        %962 = vmatprep.subr.bf16.mxu0 %v857
        %963 = vmatpush1.bf16.msra.mxu0 %v856
        %964 = vmatprep.subr.bf16.mxu0 %v861
        %965 = vmatpush1.bf16.msra.mxu0 %v860
        %966 = vmatprep.subr.bf16.mxu0 %v865
        %967 = vmatpush1.bf16.msra.mxu0 %v864
        %968 = vmatprep.subr.bf16.mxu0 %v869
        %969 = vmatpush1.bf16.msra.mxu0 %v868
        %970 = vmatprep.subr.bf16.mxu0 %v873
        %971 = vmatpush1.bf16.msra.mxu0 %v872
        %972 = vmatprep.mubr.bf16.mxu0 %v555
        %973 = vmatmul.mubr.bf16.gmra.mrb[0].mxu0 %v554
        %v974 = vpop.f32.mrb[0].mxu0
        %v975 = vadd.f32 0.0, %v974
        %v976 = vpop.f32.mrb[0].mxu0
        %v977 = vadd.f32 0.0, %v976
        %v978 = vpop.f32.mrb[0].mxu0
        %v979 = vadd.f32 0.0, %v978
        %v980 = vpop.f32.mrb[0].mxu0
        %v981 = vadd.f32 0.0, %v980
        %982 = vdwg.mxu0
        %983 = vmatprep.subr.bf16.mxu0 %v815
        %984 = vmatpush1.bf16.msra.mxu0 %v814
        %985 = vmatprep.subr.bf16.mxu0 %v819
        %986 = vmatpush1.bf16.msra.mxu0 %v818
        %987 = vmatprep.subr.bf16.mxu0 %v823
        %988 = vmatpush1.bf16.msra.mxu0 %v822
        %989 = vmatprep.subr.bf16.mxu0 %v827
        %990 = vmatpush1.bf16.msra.mxu0 %v826
        %991 = vmatprep.subr.bf16.mxu0 %v831
        %992 = vmatpush1.bf16.msra.mxu0 %v830
        %993 = vmatprep.subr.bf16.mxu0 %v835
        %994 = vmatpush1.bf16.msra.mxu0 %v834
        %995 = vmatprep.subr.bf16.mxu0 %v839
        %996 = vmatpush1.bf16.msra.mxu0 %v838
        %997 = vmatprep.subr.bf16.mxu0 %v843
        %998 = vmatpush1.bf16.msra.mxu0 %v842
        %999 = vmatprep.subr.bf16.mxu0 %v847
        %1000 = vmatpush1.bf16.msra.mxu0 %v846
        %1001 = vmatprep.subr.bf16.mxu0 %v851
        %1002 = vmatpush1.bf16.msra.mxu0 %v850
        %1003 = vmatprep.subr.bf16.mxu0 %v855
        %1004 = vmatpush1.bf16.msra.mxu0 %v854
        %1005 = vmatprep.subr.bf16.mxu0 %v859
        %1006 = vmatpush1.bf16.msra.mxu0 %v858
        %1007 = vmatprep.subr.bf16.mxu0 %v863
        %1008 = vmatpush1.bf16.msra.mxu0 %v862
        %1009 = vmatprep.subr.bf16.mxu0 %v867
        %1010 = vmatpush1.bf16.msra.mxu0 %v866
        %1011 = vmatprep.subr.bf16.mxu0 %v871
        %1012 = vmatpush1.bf16.msra.mxu0 %v870
        %1013 = vmatprep.subr.bf16.mxu0 %v875
        %1014 = vmatpush1.bf16.msra.mxu0 %v874
        %1015 = vmatprep.mubr.bf16.mxu0 %v555
        %1016 = vmatmul.mubr.bf16.gmra.mrb[0].mxu0 %v554
        %v1017 = vpop.f32.mrb[0].mxu0
        %v1018 = vadd.f32 0.0, %v1017
        %v1019 = vpop.f32.mrb[0].mxu0
        %v1020 = vadd.f32 0.0, %v1019
        %v1021 = vpop.f32.mrb[0].mxu0
        %v1022 = vadd.f32 0.0, %v1021
        %v1023 = vpop.f32.mrb[0].mxu0
        %v1024 = vadd.f32 0.0, %v1023
        %1025 = vdwg.mxu0
        %v1026 = vmax.f32 %v975, %v979
        %v1027 = vrot.slane %v1026, 4
        %v1028 = vmax.f32 %v1026, %v1027
        %v1029 = vrot.slane %v1028, 2
        %v1030 = vmax.f32 %v1028, %v1029
        %v1031 = vrot.slane %v1030, 1
        %v1032 = vmax.f32 %v1030, %v1031
        %v1033 = vmax.f32 %v977, %v981
        %v1034 = vrot.slane %v1033, 4
        %v1035 = vmax.f32 %v1033, %v1034
        %v1036 = vrot.slane %v1035, 2
        %v1037 = vmax.f32 %v1035, %v1036
        %v1038 = vrot.slane %v1037, 1
        %v1039 = vmax.f32 %v1037, %v1038
        %v1040 = vmax.f32 %v1018, %v1022
        %v1041 = vrot.slane %v1040, 4
        %v1042 = vmax.f32 %v1040, %v1041
        %v1043 = vrot.slane %v1042, 2
        %v1044 = vmax.f32 %v1042, %v1043
        %v1045 = vrot.slane %v1044, 1
        %v1046 = vmax.f32 %v1044, %v1045
        %v1047 = vmax.f32 %v1020, %v1024
        %v1048 = vrot.slane %v1047, 4
        %v1049 = vmax.f32 %v1047, %v1048
        %v1050 = vrot.slane %v1049, 2
        %v1051 = vmax.f32 %v1049, %v1050
        %v1052 = vrot.slane %v1051, 1
        %v1053 = vmax.f32 %v1051, %v1052
        %p1054 = scmp.eq.s32.totalorder %s25, 0
        // Predicated region
        $region57: #{point_center_forward.1} parent=47 // pred_check
          %p1055 = pneg %p1054
        $region58: #{point_center_forward.1} parent=47 // pred_check_branch
          %1057 = sbr.rel (%p1055) target = $region60
        $region59: #{point_center_forward.1} parent=47 // pred_region
          %v1062 = vcombine.low %v1032, %v1039
          %v1063 = vcombine.low %v1046, %v1053
          %v1065 = vunpack.c.l.s4 1966171168
          %v1066 = vunpack.c.0.s8 %v1065
          %v1067 = vlaneseq
          %v1068 = vshrl.u32 %v1067, 7
          %v1069 = vsub.s32 %v1066, %v1068
          %v1070 = vrot.slane %v1062, %v1069
          %v1072 = vunpack.c.l.s4 1966171168
          %v1073 = vunpack.c.0.s8 %v1072
          %v1074 = vlaneseq
          %v1075 = vshrl.u32 %v1074, 7
          %v1076 = vsub.s32 %v1073, %v1075
          %v1077 = vrot.slane %v1063, %v1076
          %v1078 = vcombine.low %v1070, %v1077
          %v1080 = vunpack.c.l.s4 1966171168
          %v1081 = vunpack.c.0.s8 %v1080
          %v1082 = vlaneseq
          %v1083 = vshrl.u32 %v1082, 7
          %v1084 = vsub.s32 %v1081, %v1083
          %v1085 = vrot.slane %v1078, %v1084
          %v1087 = vlaneseq
          %vm1088 = vcmp.ge.s32.totalorder %v1087, 0
          %vm1089 = vcmp.lt.s32.totalorder %v1087, 512
          %vm1090 = vmand %vm1088, %vm1089
          %1091 = vst.msk [vmem:[%s334] sm:$0xf] %vm1090, %v1085
        $region60: #{point_center_forward.1} parent=47 // pred_fallthru
          _
        %p1092 = scmp.gt.s32.totalorder %s25, 0
        // Predicated region
        $region61: #{point_center_forward.1} parent=47 // pred_check
          %p1093 = pneg %p1092
        $region62: #{point_center_forward.1} parent=47 // pred_check_branch
          %1095 = sbr.rel (%p1093) target = $region64
        $region63: #{point_center_forward.1} parent=47 // pred_region
          %v1096 = vld [vmem:[%s334] sm:$0xf]
          %v1101 = vcombine.low %v1032, %v1039
          %v1102 = vcombine.low %v1046, %v1053
          %v1104 = vunpack.c.l.s4 1966171168
          %v1105 = vunpack.c.0.s8 %v1104
          %v1106 = vlaneseq
          %v1107 = vshrl.u32 %v1106, 7
          %v1108 = vsub.s32 %v1105, %v1107
          %v1109 = vrot.slane %v1101, %v1108
          %v1111 = vunpack.c.l.s4 1966171168
          %v1112 = vunpack.c.0.s8 %v1111
          %v1113 = vlaneseq
          %v1114 = vshrl.u32 %v1113, 7
          %v1115 = vsub.s32 %v1112, %v1114
          %v1116 = vrot.slane %v1102, %v1115
          %v1117 = vcombine.low %v1109, %v1116
          %v1119 = vunpack.c.l.s4 1966171168
          %v1120 = vunpack.c.0.s8 %v1119
          %v1121 = vlaneseq
          %v1122 = vshrl.u32 %v1121, 7
          %v1123 = vsub.s32 %v1120, %v1122
          %v1124 = vrot.slane %v1117, %v1123
          %v1126 = vmax.f32 %v1096, %v1124
          %v1127 = vlaneseq
          %vm1128 = vcmp.ge.s32.totalorder %v1127, 0
          %vm1129 = vcmp.lt.s32.totalorder %v1127, 512
          %vm1130 = vmand %vm1128, %vm1129
          %1131 = vst.msk [vmem:[%s334] sm:$0xf] %vm1130, %v1126
        $region64: #{point_center_forward.1} parent=47 // pred_fallthru
          _
        // Predicated region
        $region65: #{point_center_forward.1} parent=47 // pred_check
          %p1132 = pneg %p1054
        $region66: #{point_center_forward.1} parent=47 // pred_check_branch
          %1134 = sbr.rel (%p1132) target = $region68
        $region67: #{point_center_forward.1} parent=47 // pred_region
          %v1135 = vld [vmem:[%s334] sm:$0xf]
          %v1136 = vld [vmem:[%s6] sm:$0xf]
          %v1137 = vadd.f32 %v1135, %v1136
          %v1138 = vlaneseq
          %vm1139 = vcmp.ge.s32.totalorder %v1138, 0
          %vm1140 = vcmp.lt.s32.totalorder %v1138, 512
          %vm1141 = vmand %vm1139, %vm1140
          %1142 = vst.msk [vmem:[%s334] sm:$0xf] %vm1141, %v1137
        $region68: #{point_center_forward.1} parent=47 // pred_fallthru
          _
        %p1143 = scmp.lt.s32.totalorder %s24, 1
        %s1144 = scalar_select %p1143, %s24, 1
        %s1145 = smul.addr %s1144, 4
        %s1146 = scalar_lea.vmem %s7, %s1145
        // Predicated region
        $region69: #{point_center_forward.1} parent=47 // pred_check
          %p1147 = pneg %p204
        $region70: #{point_center_forward.1} parent=47 // pred_check_branch
          %1149 = sbr.rel (%p1147) target = $region72
        $region71: #{point_center_forward.1} parent=47 // pred_region
          _
        $region72: #{point_center_forward.1} parent=47 // pred_fallthru
          _
      $region48: #{point_center_forward.1} parent=5 // pred_fallthru
        _
      %p1150 = scmp.le.s32.totalorder 2, %s15
      // Predicated region
      $region73: #{point_center_forward.1} parent=5 // pred_check
        %p1151 = pneg %p1150
      $region74: #{point_center_forward.1} parent=5 // pred_check_branch
        %1153 = sbr.rel (%p1151) target = $region76
      $region75: #{point_center_forward.1} parent=5 // pred_region
        %s1154 = ssub.s32 %s15, 2
        // Predicated region
        $region77: #{point_center_forward.1} parent=75 // pred_check
          %p1155 = pneg %p210
        $region78: #{point_center_forward.1} parent=75 // pred_check_branch
          %1157 = sbr.rel (%p1155) target = $region80
        $region79: #{point_center_forward.1} parent=75 // pred_region
          %p1158 = scmp.lt.s32.totalorder %s26, 1
          %s1159 = scalar_select %p1158, %s26, 1
          %s1160 = smul.addr %s1159, 4
          %s1161 = scalar_lea.vmem %s7, %s1160
        $region80: #{point_center_forward.1} parent=75 // pred_fallthru
          _
      $region76: #{point_center_forward.1} parent=5 // pred_fallthru
        _
    $region6: #{point_center_forward.1} parent=1 // loop_footer
      %s19 = sadd.s32 1, %s15
    $region7: #{point_center_forward.1} parent=1 // loop_footer_branch
      %14 = sbr.rel target = $region3
    $region8: #{point_center_forward.1} parent=1 // loop_exit
      _
    %1162 = vsyncpa [#allocation3], 1
    %s1163 = scalar_lea.sflag [#allocation3], 1
    %1164 = vsyncpa %s1163, 1
    %1165 = vsyncpa [#allocation5], 1

</llo_original>
